<compile_context>
chip_gen: v7x
topology: tpu7x:2x2x1
jax: 0.10.0
libtpu: 0.0.40
codegen_flags: <defaults>
</compile_context>

<pallas_src>
import jax
import jax.numpy as jnp
from jax.experimental import pallas as pl
from jax.experimental.pallas import tpu as pltpu

_LANE = 128
_MAX_TILE_LANES = 2048          # diminishing returns past 1-2K lanes
_MIN_TILE_LANES = 512           # keep tiles >= 512 lanes (v5e guidance)
_TARGET_BLOCK_BYTES = 2 * 1024 * 1024   # aim for ~1-4 MiB blocks
_MIN_GRID_STEPS = 8             # enough steps to pipeline + feed v7x's 2 cores
_MAX_BATCH_BLOCK = 8            # cap kernel unrolling over fused batch elements
_MiB = 1024 * 1024


def _sublane_min_channels(dtype) -> int:
    # One full sublane tile: 8 rows f32, 16 rows bf16, 32 rows int8.
    return 8 * (4 // jnp.dtype(dtype).itemsize)


def _round_down_lane(n: int) -> int:
    return max(_LANE, (n // _LANE) * _LANE)


def _round_up(n: int, m: int) -> int:
    return ((n + m - 1) // m) * m


def _vmem_capacity_bytes() -> int:
    try:
        return int(pltpu.get_tpu_info().vmem_capacity_bytes)
    except Exception:
        return 64 * _MiB        # most conservative physical VMEM (v7x per-core)


def _largest_divisor_leq(n: int, cap: int) -> int:
    for d in range(max(1, min(n, cap)), 0, -1):
        if n % d == 0:
            return d
    return 1


def _plan(B, C, HW, itemsize):
    """Pick (NB, T, num_t, vmem_limit). Returns None if the Pallas path is infeasible."""
    capacity = _vmem_capacity_bytes()
    budget = min(32 * _MiB, int(capacity * 0.4))    # ~32 MiB v5e/v6e, ~25 MiB v7x

    per_lane = 4 * C * itemsize                     # double-buffered in + out columns
    min_needed = per_lane * _LANE
    if min_needed > budget:
        # Very large C: raise the scoped-VMEM budget rather than OOM-ing at compile.
        if min_needed <= int(capacity * 0.75):
            budget = min_needed
        else:
            return None                             # absurd C: let XLA handle it

    t_cap = min(budget // per_lane, _MAX_TILE_LANES)
    T = HW if HW <= t_cap else _round_down_lane(t_cap)
    num_t = -(-HW // T)

    # Small problems: shrink the lane tile (floor 512) so the grid has enough steps.
    while B * num_t < _MIN_GRID_STEPS and T > _MIN_TILE_LANES:
        T = max(_MIN_TILE_LANES, ((T // 2) // _LANE) * _LANE)
        num_t = -(-HW // T)

    # Fuse batch elements per block while blocks are small (amortize step overhead).
    nb_cap_block = max(1, _TARGET_BLOCK_BYTES // max(1, C * T * itemsize))
    nb_cap_steps = max(1, (B * num_t) // _MIN_GRID_STEPS)
    NB = _largest_divisor_leq(B, min(nb_cap_block, nb_cap_steps, _MAX_BATCH_BLOCK))

    # VMEM actually held by the double-buffered pipeline (with layout padding).
    block_vmem = NB * _round_up(C, 32) * _round_up(T, _LANE) * itemsize
    vmem_limit = min(int(capacity * 0.9), max(16 * _MiB, 4 * block_vmem + 4 * _MiB))
    return NB, T, num_t, vmem_limit


def _strided_kernel(groups: int, f: int, NB: int):
    """One contiguous sublane read + one strided sublane write per (batch, group)."""
    def kernel(x_ref, o_ref):
        # x_ref / o_ref: (NB, C, T) VMEM tiles.
        for bi in range(NB):
            for gi in range(groups):
                o_ref[bi, pl.ds(gi, f, stride=groups), :] = x_ref[bi, pl.ds(gi * f, f), :]
    return kernel


def _dense_kernel(groups: int, f: int, NB: int, C: int):
    """Whole-tile load -> sublane permute -> whole-tile store (portable fallback)."""
    def kernel(x_ref, o_ref):
        x = x_ref[...]                               # (NB, C, T)
        t = x.shape[-1]
        x = x.reshape(NB, groups, f, t)
        x = jnp.swapaxes(x, 1, 2)                    # (NB, f, groups, T)
        o_ref[...] = x.reshape(NB, C, t)
    return kernel


def _shuffle_pallas3(x3, groups: int, use_strided: bool, alias_input: bool = False):
    """Run the channel shuffle on an already-flattened (B, C, H*W) array."""
    B, C, HW = x3.shape
    itemsize = jnp.dtype(x3.dtype).itemsize
    plan = _plan(B, C, HW, itemsize)
    if plan is None:
        raise ValueError("no feasible Pallas tiling for this shape")
    NB, T, num_t, vmem_limit = plan
    f = C // groups
    kernel = _strided_kernel(groups, f, NB) if use_strided else _dense_kernel(groups, f, NB, C)

    kwargs = {}
    if alias_input:
        kwargs["input_output_aliases"] = {0: 0}      # same-index blocks -> safe to alias

    return pl.pallas_call(
        kernel,
        out_shape=jax.ShapeDtypeStruct((B, C, HW), x3.dtype),
        grid_spec=pltpu.PrefetchScalarGridSpec(
            num_scalar_prefetch=0,
            grid=(B // NB, num_t),
            in_specs=[pl.BlockSpec((NB, C, T), lambda b, t: (b, 0, t))],
            out_specs=pl.BlockSpec((NB, C, T), lambda b, t: (b, 0, t)),
        ),
        compiler_params=pltpu.CompilerParams(
            dimension_semantics=("parallel", "parallel"),
            vmem_limit_bytes=vmem_limit,
        ),
        cost_estimate=pl.CostEstimate(
            flops=0, transcendentals=0,
            bytes_accessed=2 * B * C * HW * itemsize,
        ),
        **kwargs,
    )(x3)


_strided_ok = None


def _strided_supported() -> bool:
    """One-time probe: does this build lower (and correctly run) strided sublane stores?"""
    global _strided_ok
    if _strided_ok is None:
        try:
            C, HW, g = 16, 256, 2
            x3 = jnp.arange(C * HW, dtype=jnp.float32).reshape(1, C, HW)
            got = jax.block_until_ready(_shuffle_pallas3(x3, g, use_strided=True))
            want = x3.reshape(1, g, C // g, HW).transpose(0, 2, 1, 3).reshape(1, C, HW)
            _strided_ok = bool(jnp.array_equal(got, want))
        except Exception:
            _strided_ok = False
    return _strided_ok


def shuffle_block_ref(x: jnp.ndarray, groups: int = 2) -> jnp.ndarray:
    """Pure-JAX reference (mirrors the einops rearranges)."""
    B, C, H, W = x.shape
    f = C // groups
    return x.reshape(B, groups, f, H, W).transpose(0, 2, 1, 3, 4).reshape(B, C, H, W)


def shuffle_block(x: jnp.ndarray, groups: int = 2, *, alias_input: bool = False) -> jnp.ndarray:
    """Channel shuffle on an NCHW tensor, matching ShuffleBlock.forward."""
    B, C, H, W = x.shape
    if groups == 1:
        return x
    assert C % groups == 0, "channels must be divisible by groups"
    HW = H * W
    itemsize = jnp.dtype(x.dtype).itemsize

    # Fast path: with fewer channels than one sublane tile a standalone kernel
    # would move sublane-padded blocks (2-8x wasted HBM bandwidth); let XLA fuse
    # the tiny gather instead.  Same fallback if no feasible tiling exists.
    if C < _sublane_min_channels(x.dtype) or _plan(B, C, HW, itemsize) is None:
        return shuffle_block_ref(x, groups)

    x3 = x.reshape(B, C, HW)   # free metadata reshape (row-major)
    if _strided_supported():
        try:
            out3 = _shuffle_pallas3(x3, groups, use_strided=True, alias_input=alias_input)
            return out3.reshape(B, C, H, W)
        except Exception:
            pass               # shape this build can't lower strided -> dense body
    out3 = _shuffle_pallas3(x3, groups, use_strided=False, alias_input=alias_input)
    return out3.reshape(B, C, H, W)


if __name__ == "__main__":
    root = jax.random.PRNGKey(0)
    keys = jax.random.split(root, 4)

    # Primary: NCHW shapes consistent with the module (groups=2); C=16 exercises
    # the Pallas path (C >= one f32 sublane tile).
    x0 = jax.random.normal(keys[0], (2, 16, 16, 16), dtype=jnp.float32)
    out0 = jax.block_until_ready(shuffle_block(x0, groups=2))
    assert out0.shape == x0.shape
    assert jnp.array_equal(out0, shuffle_block_ref(x0, groups=2)), "mismatch (primary)"

    # Tiny channel count (C < sublane tile) -> fused XLA fast path.
    x1 = jax.random.normal(keys[1], (2, 4, 16, 16), dtype=jnp.float32)
    out1 = jax.block_until_ready(shuffle_block(x1, groups=2))
    assert jnp.array_equal(out1, shuffle_block_ref(x1, groups=2)), "mismatch (small C)"

    # Ragged spatial size (H*W = 63, not a multiple of 128) and f = 12 (not a
    # multiple of the sublane tile).
    x2 = jax.random.normal(keys[2], (1, 24, 7, 9), dtype=jnp.float32)
    out2 = jax.block_until_ready(shuffle_block(x2, groups=2))
    assert jnp.array_equal(out2, shuffle_block_ref(x2, groups=2)), "mismatch (ragged)"

    # groups=3 with H*W larger than one lane tile -> multi-step lane grid with a
    # ragged (masked) last block.
    x3 = jax.random.normal(keys[3], (1, 24, 48, 48), dtype=jnp.float32)
    out3 = jax.block_until_ready(shuffle_block(x3, groups=3))
    assert jnp.array_equal(out3, shuffle_block_ref(x3, groups=3)), "mismatch (groups=3)"

    print("KERNEL_OK")
</pallas_src>

<mosaic_0001>
module attributes {stable_mosaic.version = 11 : i64} {
  func.func @kernel(%arg0: i32, %arg1: i32, %arg2: memref<1x16x256xf32, #tpu.memory_space<vmem>>, %arg3: memref<1x16x256xf32, #tpu.memory_space<vmem>>) attributes {dimension_semantics = [#tpu.dimension_semantics<parallel>, #tpu.dimension_semantics<parallel>], iteration_bounds = array<i64: 1, 1>, scalar_prefetch = 0 : i64, scratch_operands = 0 : i64, tpu.core_type = #tpu.core_type<tc>, window_params = [{transform_indices = @transform_0, window_bounds = array<i64: 1, 16, 256>}, {transform_indices = @transform_1, window_bounds = array<i64: 1, 16, 256>}]} {
    %c0 = arith.constant 0 : index
    %c0_0 = arith.constant 0 : index
    %c0_1 = arith.constant 0 : index
    %0 = vector.load %arg2[%c0, %c0_0, %c0_1] : memref<1x16x256xf32, #tpu.memory_space<vmem>>, vector<1x8x256xf32>
    %1 = vector.shape_cast %0 : vector<1x8x256xf32> to vector<8x256xf32>
    %c0_2 = arith.constant 0 : index
    %c0_3 = arith.constant 0 : index
    %c0_4 = arith.constant 0 : index
    %2 = tpu.strided_load %arg3[%c0_2, %c0_3, %c0_4] {strides = array<i32: 1, 2, 1>} : memref<1x16x256xf32, #tpu.memory_space<vmem>>, vector<1x8x256xf32>
    %3 = vector.shape_cast %2 : vector<1x8x256xf32> to vector<8x256xf32>
    %4 = vector.shape_cast %1 : vector<8x256xf32> to vector<1x8x256xf32>
    tpu.strided_store %arg3[%c0_2, %c0_3, %c0_4], %4 {strides = array<i32: 1, 2, 1>} : memref<1x16x256xf32, #tpu.memory_space<vmem>>, vector<1x8x256xf32>
    %c0_5 = arith.constant 0 : index
    %c8 = arith.constant 8 : index
    %c0_6 = arith.constant 0 : index
    %5 = vector.load %arg2[%c0_5, %c8, %c0_6] : memref<1x16x256xf32, #tpu.memory_space<vmem>>, vector<1x8x256xf32>
    %6 = vector.shape_cast %5 : vector<1x8x256xf32> to vector<8x256xf32>
    %c0_7 = arith.constant 0 : index
    %c1 = arith.constant 1 : index
    %c0_8 = arith.constant 0 : index
    %7 = tpu.strided_load %arg3[%c0_7, %c1, %c0_8] {strides = array<i32: 1, 2, 1>} : memref<1x16x256xf32, #tpu.memory_space<vmem>>, vector<1x8x256xf32>
    %8 = vector.shape_cast %7 : vector<1x8x256xf32> to vector<8x256xf32>
    %9 = vector.shape_cast %6 : vector<8x256xf32> to vector<1x8x256xf32>
    tpu.strided_store %arg3[%c0_7, %c1, %c0_8], %9 {strides = array<i32: 1, 2, 1>} : memref<1x16x256xf32, #tpu.memory_space<vmem>>, vector<1x8x256xf32>
    return
  }
  func.func @transform_0(%arg0: i32, %arg1: i32) -> (i32, i32, i32) {
    %c0_i32 = arith.constant 0 : i32
    %c0_i32_0 = arith.constant 0 : i32
    return %arg0, %c0_i32, %arg1 : i32, i32, i32
  }
  func.func @transform_1(%arg0: i32, %arg1: i32) -> (i32, i32, i32) {
    %c0_i32 = arith.constant 0 : i32
    %c0_i32_0 = arith.constant 0 : i32
    return %arg0, %c0_i32, %arg1 : i32, i32, i32
  }
}

module attributes {stable_mosaic.version = 11 : i64} {
  func.func @kernel(%arg0: i32, %arg1: i32, %arg2: memref<1x16x256xf32, #tpu.memory_space<vmem>>, %arg3: memref<1x16x256xf32, #tpu.memory_space<vmem>>) attributes {dimension_semantics = [#tpu.dimension_semantics<parallel>, #tpu.dimension_semantics<parallel>], iteration_bounds = array<i64: 2, 1>, scalar_prefetch = 0 : i64, scratch_operands = 0 : i64, tpu.core_type = #tpu.core_type<tc>, window_params = [{transform_indices = @transform_0, window_bounds = array<i64: 1, 16, 256>}, {transform_indices = @transform_1, window_bounds = array<i64: 1, 16, 256>}]} {
    %c0 = arith.constant 0 : index
    %c0_0 = arith.constant 0 : index
    %c0_1 = arith.constant 0 : index
    %0 = vector.load %arg2[%c0, %c0_0, %c0_1] : memref<1x16x256xf32, #tpu.memory_space<vmem>>, vector<1x16x256xf32>
    %1 = vector.shape_cast %0 : vector<1x16x256xf32> to vector<1x2x8x256xf32>
    %2 = tpu.transpose %1, [0, 2, 1, 3] : vector<1x2x8x256xf32> -> vector<1x8x2x256xf32>
    %3 = vector.shape_cast %2 : vector<1x8x2x256xf32> to vector<1x16x256xf32>
    %c0_2 = arith.constant 0 : index
    %c0_3 = arith.constant 0 : index
    %c0_4 = arith.constant 0 : index
    %4 = vector.load %arg3[%c0_2, %c0_3, %c0_4] : memref<1x16x256xf32, #tpu.memory_space<vmem>>, vector<1x16x256xf32>
    tpu.vector_store %arg3[%c0_2, %c0_3, %c0_4], %3 {strides = array<i32>} : memref<1x16x256xf32, #tpu.memory_space<vmem>>, vector<1x16x256xf32>,
    return
  }
  func.func @transform_0(%arg0: i32, %arg1: i32) -> (i32, i32, i32) {
    %c0_i32 = arith.constant 0 : i32
    %c0_i32_0 = arith.constant 0 : i32
    return %arg0, %c0_i32, %arg1 : i32, i32, i32
  }
  func.func @transform_1(%arg0: i32, %arg1: i32) -> (i32, i32, i32) {
    %c0_i32 = arith.constant 0 : i32
    %c0_i32_0 = arith.constant 0 : i32
    return %arg0, %c0_i32, %arg1 : i32, i32, i32
  }
}

</mosaic_0001>

<llo_original>
// kernel: tpu_custom_call.1
$region0: #{tpu_custom_call.1}
  #allocation0 [shape = 'u32[]', space=smem, size = 0x4, offset = 0x4, fixed_abs, tag = 'smem constant byte address 0x4 - core index']
  #allocation1 [shape = 'u32[144,128]{1,0:T(1,128)}', space=vmem, size = 0x12000, scoped, tag = 'internal scratch']
  %s0 = inlined_call_operand.hbm [shape: f32[2,16,256], index: 0, kind: input, shape index: {}]
  %s1 = inlined_call_operand.hbm [shape: f32[2,16,256], index: 1, kind: output, shape index: {}]
  %s2 = sld [smem:[#allocation0]]
  $region41: #{tpu_custom_call.1} parent=0
    _
  %s4 = ssub.s32 1, %s2
  %s5 = scalar_select 0, %s4, %s2
  $region1: #{tpu_custom_call.1} parent=0
    #allocation2 [shape = 'u8[32768]{0}', space=vmem, size = 0x8000, scoped, tag = 'input window, operand 0']
    #allocation3 [shape = 's32[2]{0}', space=sflag, size = 0x8, scoped, tag = 'scoped memory for tpu_custom_call.1']
    #allocation4 [shape = 's32[2]{0}', space=sflag, size = 0x8, scoped, tag = 'scoped memory for tpu_custom_call.1']
    #allocation5 [shape = 'u8[32768]{0}', space=vmem, size = 0x8000, scoped, tag = 'output window, operand 0']
    %6 = vsyncpa [#allocation3], 0
    %s7 = scalar_lea.sflag [#allocation3], 1
    %8 = vsyncpa %s7, 0
    %9 = vsyncpa [#allocation4], 0
    %s10 = scalar_lea.sflag [#allocation4], 1
    %11 = vsyncpa %s10, 0
    loop: start=0, step=1, limit=4
    $region2: #{tpu_custom_call.1} parent=1 // loop_pre_header
      _
    $region3: #{tpu_custom_call.1} parent=1 // loop_header
      %s13 = sphi 0, %s17
      %p14 = scmp.ge.s32.totalorder %s13, 4
      %s20 = sphi 0, %s32
      %s21 = sphi 0, %s28
      %s22 = sphi 0, %s20
      %s23 = sphi 0, %s21
      %s24 = sphi 0, %s22
      %s25 = sphi 0, %s23
      %s37 = sphi 0, %s39
      %s40 = sphi 0, %s37
      %s41 = sphi 0, %s40
      %s57 = sphi 0, %s41
      %s65 = sphi 0, %s67
      %s68 = sphi 0, %s65
      %s69 = sphi 0, %s68
      %s85 = sphi 0, %s69
    $region4: #{tpu_custom_call.1} parent=1 // loop_header_branch
      %16 = sbr.rel (%p14) target = $region8
    $region5: #{tpu_custom_call.1} parent=1 // loop_body
      %s18 = ssub.s32 %s13, 1
      %s19 = ssub.s32 %s13, 2
      %s26 = sadd.s32 1, %s21
      %p27 = scmp.ge.s32.totalorder %s26, 1
      %s28 = scalar_select %p27, 0, %s26
      %s29 = sadd.s32 1, %s20
      %s30 = scalar_select %p27, %s29, %s20
      %p31 = scmp.ge.s32.totalorder %s30, 2
      %s32 = scalar_select %p31, 0, %s30
      %s33 = ssub.s32 %s20, %s32
      %s34 = ssub.s32 %s21, %s28
      %s35 = sor.u32 %s33, %s34
      %p36 = scmp.eq.s32.totalorder %s35, 0
      %s38 = sadd.s32 %s37, 1
      %s39 = scalar_select %p36, %s37, %s38
      %p42 = pneg %p36
      %p43 = scmp.eq.s32.totalorder %s13, 1
      %p44 = por %p42, %p43
      %p45 = scmp.ne.s32.totalorder %s37, %s40
      %p46 = scmp.eq.s32.totalorder %s13, 0
      %p47 = por %p45, %p46
      %p48 = scmp.ne.s32.totalorder %s37, %s40
      %p49 = scmp.eq.s32.totalorder %s18, 1
      %p50 = por %p48, %p49
      %p51 = scmp.ne.s32.totalorder %s40, %s41
      %p52 = scmp.eq.s32.totalorder %s18, 0
      %p53 = por %p51, %p52
      %p54 = scmp.ne.s32.totalorder %s40, %s41
      %p55 = scmp.eq.s32.totalorder %s19, 1
      %p56 = por %p54, %p55
      %p58 = scmp.ne.s32.totalorder %s41, %s57
      %p59 = scmp.eq.s32.totalorder %s19, 0
      %p60 = por %p58, %p59
      %s61 = ssub.s32 %s20, %s32
      %s62 = ssub.s32 %s21, %s28
      %s63 = sor.u32 %s61, %s62
      %p64 = scmp.eq.s32.totalorder %s63, 0
      %s66 = sadd.s32 %s65, 1
      %s67 = scalar_select %p64, %s65, %s66
      %p70 = pneg %p64
      %p71 = scmp.eq.s32.totalorder %s13, 1
      %p72 = por %p70, %p71
      %p73 = scmp.ne.s32.totalorder %s65, %s68
      %p74 = scmp.eq.s32.totalorder %s13, 0
      %p75 = por %p73, %p74
      %p76 = scmp.ne.s32.totalorder %s65, %s68
      %p77 = scmp.eq.s32.totalorder %s18, 1
      %p78 = por %p76, %p77
      %p79 = scmp.ne.s32.totalorder %s68, %s69
      %p80 = scmp.eq.s32.totalorder %s18, 0
      %p81 = por %p79, %p80
      %p82 = scmp.ne.s32.totalorder %s68, %s69
      %p83 = scmp.eq.s32.totalorder %s19, 1
      %p84 = por %p82, %p83
      %p86 = scmp.ne.s32.totalorder %s69, %s85
      %p87 = scmp.eq.s32.totalorder %s19, 0
      %p88 = por %p86, %p87
      %p89 = scmp.le.s32.totalorder 1, %s13
      %p90 = scmp.lt.s32.totalorder %s13, 3
      %p91 = pnand %p89, %p90
      %p92 = pneg %p91
      // Predicated region
      $region9: #{tpu_custom_call.1} parent=5 // pred_check
        _
      $region10: #{tpu_custom_call.1} parent=5 // pred_check_branch
        %94 = sbr.rel (%p91) target = $region12
      $region11: #{tpu_custom_call.1} parent=5 // pred_region
        %s95 = ssub.s32 %s13, 1
      $region12: #{tpu_custom_call.1} parent=5 // pred_fallthru
        _
      %p96 = scmp.lt.s32.totalorder %s13, 2
      // Predicated region
      $region13: #{tpu_custom_call.1} parent=5 // pred_check
        %p97 = pneg %p96
      $region14: #{tpu_custom_call.1} parent=5 // pred_check_branch
        %99 = sbr.rel (%p97) target = $region16
      $region15: #{tpu_custom_call.1} parent=5 // pred_region
        // Predicated region
        $region17: #{tpu_custom_call.1} parent=15 // pred_check
          %p100 = pneg %p47
        $region18: #{tpu_custom_call.1} parent=15 // pred_check_branch
          %102 = sbr.rel (%p100) target = $region20
        $region19: #{tpu_custom_call.1} parent=15 // pred_region
          %s103 = sand.u32 %s37, 1
          %s104 = scalar_lea.sflag [#allocation3], %s103
          %s105 = sand.u32 %s37, 1
          %s106 = smul.addr %s105, 32
          %s107 = scalar_lea.vmem [#allocation2], %s106
          %s108 = smul.u32 2, %s21
          %s110 = ssub.s32 512, 512
          %111 = vsyncadd %s104, %s110
          %s112 = smul.addr %s20, 4
          %s113 = sadd.s32 %s108, %s112
          %s114 = smul.addr %s113, 128
          %s115 = scalar_lea.hbm %s0, %s114
          %s116 = sshll.u32 %s107, 4
          %s117 = int_to_ptr.vmem [resolvable:$true] %s116
          %122 = dma.hbm_to_vmem [thread:$0]  %s115, 512, %s117, %s104, 256, 256, 16
        $region20: #{tpu_custom_call.1} parent=15 // pred_fallthru
          _
      $region16: #{tpu_custom_call.1} parent=5 // pred_fallthru
        _
      %p123 = scmp.le.s32.totalorder 1, %s13
      %p124 = scmp.lt.s32.totalorder %s13, 3
      %p125 = pnand %p123, %p124
      %p126 = pneg %p125
      // Predicated region
      $region21: #{tpu_custom_call.1} parent=5 // pred_check
        _
      $region22: #{tpu_custom_call.1} parent=5 // pred_check_branch
        %128 = sbr.rel (%p125) target = $region24
      $region23: #{tpu_custom_call.1} parent=5 // pred_region
        %s129 = ssub.s32 %s13, 1
        %s130 = sand.u32 %s40, 1
        %s131 = scalar_lea.sflag [#allocation3], %s130
        %s132 = sand.u32 %s40, 1
        %s133 = smul.addr %s132, 32
        %s134 = scalar_lea.vmem [#allocation2], %s133
        // Predicated region
        $region25: #{tpu_custom_call.1} parent=23 // pred_check
          %p135 = pneg %p53
        $region26: #{tpu_custom_call.1} parent=23 // pred_check_branch
          %137 = sbr.rel (%p135) target = $region28
        $region27: #{tpu_custom_call.1} parent=23 // pred_region
          %138 = dma.done %s131, 512
        $region28: #{tpu_custom_call.1} parent=23 // pred_fallthru
          _
        %s139 = sand.u32 %s40, 1
        %s140 = scalar_lea.sflag [#allocation3], %s139
        %s141 = sand.u32 %s40, 1
        %s142 = smul.addr %s141, 32
        %s143 = scalar_lea.vmem [#allocation2], %s142
        %p144 = pneg %p53
        %p145 = pneg %p50
        %p146 = pneg %p81
        %p147 = pneg %p78
        %s148 = sand.u32 %s68, 1
        %s149 = scalar_lea.sflag [#allocation4], %s148
        %s150 = sand.u32 %s68, 1
        %s151 = smul.addr %s150, 32
        %s152 = scalar_lea.vmem [#allocation5], %s151
        %s153 = smul.u32 2, %s23
        %s154 = smul.u32 2, %s23
        %v155 = vld [vmem:[%s134] sm:$0xff]
        %v156 = vld [vmem:[%s134 + $0x8] sm:$0xff]
        %v157 = vld [vmem:[%s134 + $0x10] sm:$0xff]
        %v158 = vld [vmem:[%s134 + $0x18] sm:$0xff]
        %v159 = vcombine.high %v155, 0.0
        %v161 = vunpack.c.l.s4 1983009808
        %v162 = vunpack.c.0.s8 %v161
        %v163 = vlaneseq
        %v164 = vshrl.u32 %v163, 7
        %v165 = vsub.s32 %v162, %v164
        %v166 = vrot.slane %v155, %v165
        %v168 = vunpack.c.l.s4 1983009808
        %v169 = vunpack.c.0.s8 %v168
        %v170 = vlaneseq
        %v171 = vshrl.u32 %v170, 7
        %v172 = vsub.s32 %v169, %v171
        %v173 = vrot.slane %v159, %v172
        %v174 = vcombine.high %v157, 0.0
        %v176 = vunpack.c.l.s4 1983009808
        %v177 = vunpack.c.0.s8 %v176
        %v178 = vlaneseq
        %v179 = vshrl.u32 %v178, 7
        %v180 = vsub.s32 %v177, %v179
        %v181 = vrot.slane %v157, %v180
        %v183 = vunpack.c.l.s4 1983009808
        %v184 = vunpack.c.0.s8 %v183
        %v185 = vlaneseq
        %v186 = vshrl.u32 %v185, 7
        %v187 = vsub.s32 %v184, %v186
        %v188 = vrot.slane %v174, %v187
        %v189 = vcombine.low %v166, %v181
        %v190 = vcombine.high %v166, %v181
        %v192 = vunpack.c.l.s4 1934713408
        %v193 = vunpack.c.0.s8 %v192
        %v194 = vlaneseq
        %v195 = vshrl.u32 %v194, 7
        %v196 = vsub.s32 %v193, %v195
        %v197 = vrot.slane %v189, %v196
        %v199 = vunpack.c.l.s4 1934713408
        %v200 = vunpack.c.0.s8 %v199
        %v201 = vlaneseq
        %v202 = vshrl.u32 %v201, 7
        %v203 = vsub.s32 %v200, %v202
        %v204 = vrot.slane %v190, %v203
        %v205 = vcombine.low %v173, %v188
        %v206 = vcombine.high %v173, %v188
        %v208 = vunpack.c.l.s4 1934713408
        %v209 = vunpack.c.0.s8 %v208
        %v210 = vlaneseq
        %v211 = vshrl.u32 %v210, 7
        %v212 = vsub.s32 %v209, %v211
        %v213 = vrot.slane %v205, %v212
        %v215 = vunpack.c.l.s4 1934713408
        %v216 = vunpack.c.0.s8 %v215
        %v217 = vlaneseq
        %v218 = vshrl.u32 %v217, 7
        %v219 = vsub.s32 %v216, %v218
        %v220 = vrot.slane %v206, %v219
        %v221 = vcombine.high %v197, 0.0
        %v222 = vcombine.high %v204, 0.0
        %v223 = vcombine.high %v213, 0.0
        %v224 = vcombine.high %v220, 0.0
        %v225 = vcombine.high %v156, 0.0
        %v227 = vunpack.c.l.s4 1983009808
        %v228 = vunpack.c.0.s8 %v227
        %v229 = vlaneseq
        %v230 = vshrl.u32 %v229, 7
        %v231 = vsub.s32 %v228, %v230
        %v232 = vrot.slane %v156, %v231
        %v234 = vunpack.c.l.s4 1983009808
        %v235 = vunpack.c.0.s8 %v234
        %v236 = vlaneseq
        %v237 = vshrl.u32 %v236, 7
        %v238 = vsub.s32 %v235, %v237
        %v239 = vrot.slane %v225, %v238
        %v240 = vcombine.high %v158, 0.0
        %v242 = vunpack.c.l.s4 1983009808
        %v243 = vunpack.c.0.s8 %v242
        %v244 = vlaneseq
        %v245 = vshrl.u32 %v244, 7
        %v246 = vsub.s32 %v243, %v245
        %v247 = vrot.slane %v158, %v246
        %v249 = vunpack.c.l.s4 1983009808
        %v250 = vunpack.c.0.s8 %v249
        %v251 = vlaneseq
        %v252 = vshrl.u32 %v251, 7
        %v253 = vsub.s32 %v250, %v252
        %v254 = vrot.slane %v240, %v253
        %v255 = vcombine.low %v232, %v247
        %v256 = vcombine.high %v232, %v247
        %v258 = vunpack.c.l.s4 1934713408
        %v259 = vunpack.c.0.s8 %v258
        %v260 = vlaneseq
        %v261 = vshrl.u32 %v260, 7
        %v262 = vsub.s32 %v259, %v261
        %v263 = vrot.slane %v255, %v262
        %v265 = vunpack.c.l.s4 1934713408
        %v266 = vunpack.c.0.s8 %v265
        %v267 = vlaneseq
        %v268 = vshrl.u32 %v267, 7
        %v269 = vsub.s32 %v266, %v268
        %v270 = vrot.slane %v256, %v269
        %v271 = vcombine.low %v239, %v254
        %v272 = vcombine.high %v239, %v254
        %v274 = vunpack.c.l.s4 1934713408
        %v275 = vunpack.c.0.s8 %v274
        %v276 = vlaneseq
        %v277 = vshrl.u32 %v276, 7
        %v278 = vsub.s32 %v275, %v277
        %v279 = vrot.slane %v271, %v278
        %v281 = vunpack.c.l.s4 1934713408
        %v282 = vunpack.c.0.s8 %v281
        %v283 = vlaneseq
        %v284 = vshrl.u32 %v283, 7
        %v285 = vsub.s32 %v282, %v284
        %v286 = vrot.slane %v272, %v285
        %v287 = vcombine.high %v263, 0.0
        %v288 = vcombine.high %v270, 0.0
        %v289 = vcombine.high %v279, 0.0
        %v290 = vcombine.high %v286, 0.0
        %v307 = vcombine.low %v197, %v263
        %v309 = vunpack.c.l.s4 1983009808
        %v310 = vunpack.c.0.s8 %v309
        %v311 = vlaneseq
        %v312 = vshrl.u32 %v311, 7
        %v313 = vsub.s32 %v310, %v312
        %v314 = vrot.slane %v307, %v313
        %v315 = vcombine.low %v221, %v287
        %v317 = vunpack.c.l.s4 1983009808
        %v318 = vunpack.c.0.s8 %v317
        %v319 = vlaneseq
        %v320 = vshrl.u32 %v319, 7
        %v321 = vsub.s32 %v318, %v320
        %v322 = vrot.slane %v315, %v321
        %v323 = vcombine.low %v204, %v270
        %v325 = vunpack.c.l.s4 1983009808
        %v326 = vunpack.c.0.s8 %v325
        %v327 = vlaneseq
        %v328 = vshrl.u32 %v327, 7
        %v329 = vsub.s32 %v326, %v328
        %v330 = vrot.slane %v323, %v329
        %v331 = vcombine.low %v222, %v288
        %v333 = vunpack.c.l.s4 1983009808
        %v334 = vunpack.c.0.s8 %v333
        %v335 = vlaneseq
        %v336 = vshrl.u32 %v335, 7
        %v337 = vsub.s32 %v334, %v336
        %v338 = vrot.slane %v331, %v337
        %v339 = vcombine.low %v213, %v279
        %v341 = vunpack.c.l.s4 1983009808
        %v342 = vunpack.c.0.s8 %v341
        %v343 = vlaneseq
        %v344 = vshrl.u32 %v343, 7
        %v345 = vsub.s32 %v342, %v344
        %v346 = vrot.slane %v339, %v345
        %v347 = vcombine.low %v223, %v289
        %v349 = vunpack.c.l.s4 1983009808
        %v350 = vunpack.c.0.s8 %v349
        %v351 = vlaneseq
        %v352 = vshrl.u32 %v351, 7
        %v353 = vsub.s32 %v350, %v352
        %v354 = vrot.slane %v347, %v353
        %v355 = vcombine.low %v220, %v286
        %v357 = vunpack.c.l.s4 1983009808
        %v358 = vunpack.c.0.s8 %v357
        %v359 = vlaneseq
        %v360 = vshrl.u32 %v359, 7
        %v361 = vsub.s32 %v358, %v360
        %v362 = vrot.slane %v355, %v361
        %v363 = vcombine.low %v224, %v290
        %v365 = vunpack.c.l.s4 1983009808
        %v366 = vunpack.c.0.s8 %v365
        %v367 = vlaneseq
        %v368 = vshrl.u32 %v367, 7
        %v369 = vsub.s32 %v366, %v368
        %v370 = vrot.slane %v363, %v369
        %v371 = vcombine.low %v314, %v322
        %v372 = vcombine.low %v330, %v338
        %v374 = vunpack.c.l.s4 1983009808
        %v375 = vunpack.c.0.s8 %v374
        %v376 = vlaneseq
        %v377 = vshrl.u32 %v376, 7
        %v378 = vsub.s32 %v375, %v377
        %v379 = vrot.slane %v371, %v378
        %v381 = vunpack.c.l.s4 1983009808
        %v382 = vunpack.c.0.s8 %v381
        %v383 = vlaneseq
        %v384 = vshrl.u32 %v383, 7
        %v385 = vsub.s32 %v382, %v384
        %v386 = vrot.slane %v372, %v385
        %v387 = vcombine.low %v379, %v386
        %v388 = vcombine.high %v379, %v386
        %v389 = vcombine.low %v346, %v354
        %v390 = vcombine.low %v362, %v370
        %v392 = vunpack.c.l.s4 1983009808
        %v393 = vunpack.c.0.s8 %v392
        %v394 = vlaneseq
        %v395 = vshrl.u32 %v394, 7
        %v396 = vsub.s32 %v393, %v395
        %v397 = vrot.slane %v389, %v396
        %v399 = vunpack.c.l.s4 1983009808
        %v400 = vunpack.c.0.s8 %v399
        %v401 = vlaneseq
        %v402 = vshrl.u32 %v401, 7
        %v403 = vsub.s32 %v400, %v402
        %v404 = vrot.slane %v390, %v403
        %v405 = vcombine.low %v397, %v404
        %v406 = vcombine.high %v397, %v404
        %411 = vst [vmem:[%s152] sm:$0xff] %v387
        %412 = vst [vmem:[%s152 + $0x8] sm:$0xff] %v388
        %413 = vst [vmem:[%s152 + $0x10] sm:$0xff] %v405
        %414 = vst [vmem:[%s152 + $0x18] sm:$0xff] %v406
        %s415 = sand.u32 %s68, 1
        %s416 = scalar_lea.sflag [#allocation4], %s415
        %s417 = sand.u32 %s68, 1
        %s418 = smul.addr %s417, 32
        %s419 = scalar_lea.vmem [#allocation5], %s418
        // Predicated region
        $region29: #{tpu_custom_call.1} parent=23 // pred_check
          %p420 = pneg %p78
        $region30: #{tpu_custom_call.1} parent=23 // pred_check_branch
          %422 = sbr.rel (%p420) target = $region32
        $region31: #{tpu_custom_call.1} parent=23 // pred_region
          %s423 = smul.u32 2, %s23
          %s425 = ssub.s32 512, 512
          %426 = vsyncadd %s416, %s425
          %s427 = smul.addr %s22, 4
          %s428 = sadd.s32 %s423, %s427
          %s429 = smul.addr %s428, 128
          %s430 = scalar_lea.hbm %s1, %s429
          %s431 = sshll.u32 %s419, 4
          %s432 = int_to_ptr.vmem [resolvable:$true] %s431
          %437 = dma.vmem_to_hbm [thread:$0]  %s432, 512, %s430, %s416, 256, 256, 16
        $region32: #{tpu_custom_call.1} parent=23 // pred_fallthru
          _
      $region24: #{tpu_custom_call.1} parent=5 // pred_fallthru
        _
      %p438 = scmp.le.s32.totalorder 2, %s13
      // Predicated region
      $region33: #{tpu_custom_call.1} parent=5 // pred_check
        %p439 = pneg %p438
      $region34: #{tpu_custom_call.1} parent=5 // pred_check_branch
        %441 = sbr.rel (%p439) target = $region36
      $region35: #{tpu_custom_call.1} parent=5 // pred_region
        %s442 = ssub.s32 %s13, 2
        // Predicated region
        $region37: #{tpu_custom_call.1} parent=35 // pred_check
          %p443 = pneg %p84
        $region38: #{tpu_custom_call.1} parent=35 // pred_check_branch
          %445 = sbr.rel (%p443) target = $region40
        $region39: #{tpu_custom_call.1} parent=35 // pred_region
          %s446 = sand.u32 %s69, 1
          %s447 = scalar_lea.sflag [#allocation4], %s446
          %s448 = sand.u32 %s69, 1
          %s449 = smul.addr %s448, 32
          %s450 = scalar_lea.vmem [#allocation5], %s449
          %451 = dma.done %s447, 512
        $region40: #{tpu_custom_call.1} parent=35 // pred_fallthru
          _
      $region36: #{tpu_custom_call.1} parent=5 // pred_fallthru
        _
    $region6: #{tpu_custom_call.1} parent=1 // loop_footer
      %s17 = sadd.s32 1, %s13
    $region7: #{tpu_custom_call.1} parent=1 // loop_footer_branch
      %12 = sbr.rel target = $region3
    $region8: #{tpu_custom_call.1} parent=1 // loop_exit
      _
    %452 = vsyncpa [#allocation3], 1
    %s453 = scalar_lea.sflag [#allocation3], 1
    %454 = vsyncpa %s453, 1
    %455 = vsyncpa [#allocation4], 1
    %s456 = scalar_lea.sflag [#allocation4], 1
    %457 = vsyncpa %s456, 1

</llo_original>
